<compile_context>
chip_gen: v7x
topology: tpu7x:2x2x1
jax: 0.10.0
libtpu: 0.0.40
codegen_flags: <defaults>
</compile_context>

<pallas_src>
import jax
import jax.numpy as jnp
from jax import lax
from jax.experimental import pallas as pl
from jax.experimental.pallas import tpu as pltpu


def make_mhca_kernel(Bb, N, D):
    """Kernel for one grid step covering Bb batches of the (B*N, D) input."""

    def mhca_kernel(x_ref, wqkv_ref, scale_ref, bias_ref, wout_ref, bout_ref,
                    o_ref, att_ref):
        # x_ref:    (Bb*N, D)  f32  (cast to bf16 in-kernel)
        # wqkv_ref: (D, 3D)    bf16
        # scale_ref:(1, D)     f32  per-head scale expanded per channel
        # bias_ref: (D, D)     f32  block-diagonal additive mask (0 / -1e30)
        # wout_ref: (D, D)     bf16
        # bout_ref: (1, D)     f32
        # o_ref:    (Bb*N, D)  out dtype (lane-dense 2D slab)
        # att_ref:  (Bb*N, D)  f32 VMEM scratch (per-batch attention outputs)

        x2 = x_ref[...].astype(jnp.bfloat16)

        # qkv projection: one tall bf16 x bf16 MXU matmul, f32 accumulation.
        qkv = jnp.dot(x2, wqkv_ref[...], preferred_element_type=jnp.float32)

        # Fold the per-head scale into q with a single per-channel multiply.
        q = qkv[:, 0:D] * scale_ref[...]
        k = qkv[:, D:2 * D]
        v = qkv[:, 2 * D:3 * D]

        bias = bias_ref[...]  # loaded once per grid step from VMEM

        for b in range(Bb):  # small static unroll; Bb is bounded in wrapper
            r0 = b * N
            # Slice while still f32 (8-row f32 sublane tiles are aligned),
            # cast each (N, D) slice to bf16 only after slicing.
            qb = q[r0:r0 + N, :].astype(jnp.bfloat16)
            kb = k[r0:r0 + N, :].astype(jnp.bfloat16)
            vb = v[r0:r0 + N, :].astype(jnp.bfloat16)

            # All-head channel scores at once: (D, D) = q^T k, contracting
            # over N without an explicit transpose (proven lowering).
            dots = lax.dot_general(
                qb, kb, (((0,), (0,)), ((), ())),
                preferred_element_type=jnp.float32)
            # NOTE: dots/bias must stay f32 (-1e30 mask; keep the invariant).
            dots = dots + bias

            # Row-wise softmax in f32; reciprocal on the EUP.
            m = jnp.max(dots, axis=-1, keepdims=True)
            e = jnp.exp(dots - m)
            s = jnp.sum(e, axis=-1, keepdims=True)
            attn = e * pl.reciprocal(s, approx=True)

            # out_b = v @ attn  (block-diagonal attn == per-head attention).
            ob = jnp.dot(vb, attn.astype(jnp.bfloat16),
                         preferred_element_type=jnp.float32)
            # Tile-aligned f32 VMEM store; avoids a sublane concatenate.
            att_ref[r0:r0 + N, :] = ob

        # Output projection with bias over the full (Bb*N, D) tile.
        y = jnp.dot(att_ref[...].astype(jnp.bfloat16), wout_ref[...],
                    preferred_element_type=jnp.float32) + bout_ref[...]
        o_ref[...] = y.astype(o_ref.dtype)

    return mhca_kernel


def _device_kind():
    try:
        return jax.devices()[0].device_kind.lower()
    except Exception:
        return ""


def _pick_block_b(B, N, two_tensorcores):
    """Batches per grid step.

    Single-TC parts (v5e/v6e): the grid is a serial loop, so prefer one big
    step (tallest projection tile, least per-step overhead).  On v7x (2 TCs)
    keep >= 2 grid steps so both cores get work on the "parallel" batch axis.
    """
    target_rows = 512                       # rows fed to the MXU per step
    max_unroll = 16                         # bound the static batch unroll
    target = max(1, min(target_rows // max(N, 1), max_unroll))
    bb = 1
    for cand in range(1, B + 1):
        if B % cand == 0 and cand <= target:
            bb = cand
    if two_tensorcores and B >= 2 and B // bb < 2:
        for cand in range(bb, 0, -1):
            if B % cand == 0 and B // cand >= 2:
                bb = cand
                break
    # (8, 128) block constraint: keep the row-block sublane-tile friendly
    # (full-array blocks are always allowed).
    if (bb * N) % 8 != 0 and bb != B:
        bb = B
    return bb


def mhca_pallas(x, w_qkv, scale, w_out, b_out, heads, block_b=None):
    B, N, D = x.shape
    H = heads
    assert D % H == 0
    d = D // H

    kind = _device_kind()
    is_v7x = ("v7" in kind) or ("7x" in kind)
    Bb = _pick_block_b(B, N, two_tensorcores=is_v7x) if block_b is None else block_b
    assert B % Bb == 0
    grid = (B // Bb,)

    # Weights in bf16 for the MXU; x itself is NOT pre-cast (done in-kernel).
    wqkv_bf = w_qkv.astype(jnp.bfloat16)
    wout_bf = w_out.astype(jnp.bfloat16)
    scale_row = jnp.repeat(scale.reshape(H), d).reshape(1, D).astype(jnp.float32)
    bout_row = b_out.reshape(1, D).astype(jnp.float32)

    # Block-diagonal additive mask, built once (constant-index input).
    head_id = jnp.arange(D, dtype=jnp.int32) // d
    bias = jnp.where(head_id[:, None] == head_id[None, :],
                     0.0, -1e30).astype(jnp.float32)

    # Present x / output as lane-dense 2D (B*N, D) slabs (reshape is free).
    x2d = x.reshape(B * N, D)

    kernel = make_mhca_kernel(Bb, N, D)

    # Constant-index operands only need a single pipeline buffer; only worth
    # it when the weights are big enough to matter for VMEM (v7x: 64 MiB).
    wk = {"pipeline_mode": pl.Buffered(1)} if D >= 512 else {}

    flops = (2 * B * N * D * 3 * D        # qkv projection
             + 2 * B * D * D * N          # q^T k
             + 2 * B * N * D * D          # v @ attn
             + 2 * B * N * D * D)         # output projection
    bytes_accessed = (B * N * D * x.dtype.itemsize      # x in
                      + B * N * D * x.dtype.itemsize    # out
                      + D * 3 * D * 2 + D * D * 2       # bf16 weights
                      + D * D * 4 + 2 * D * 4)          # bias + scale + bout
    cost = pl.CostEstimate(flops=flops, transcendentals=B * D * D,
                           bytes_accessed=bytes_accessed)

    vmem_limit = (48 if is_v7x else 64) * 1024 * 1024

    out2d = pl.pallas_call(
        kernel,
        out_shape=jax.ShapeDtypeStruct((B * N, D), x.dtype),
        grid_spec=pltpu.PrefetchScalarGridSpec(
            num_scalar_prefetch=0,
            grid=grid,
            in_specs=[
                pl.BlockSpec((Bb * N, D), lambda i: (i, 0)),          # x
                pl.BlockSpec((D, 3 * D), lambda i: (0, 0), **wk),     # w_qkv
                pl.BlockSpec((1, D), lambda i: (0, 0)),               # scale
                pl.BlockSpec((D, D), lambda i: (0, 0), **wk),         # bias
                pl.BlockSpec((D, D), lambda i: (0, 0), **wk),         # w_out
                pl.BlockSpec((1, D), lambda i: (0, 0)),               # b_out
            ],
            out_specs=pl.BlockSpec((Bb * N, D), lambda i: (i, 0)),
            scratch_shapes=[pltpu.VMEM((Bb * N, D), jnp.float32)],
        ),
        compiler_params=pltpu.CompilerParams(
            dimension_semantics=("parallel",),
            vmem_limit_bytes=vmem_limit,
        ),
        cost_estimate=cost,
    )(x2d, wqkv_bf, scale_row, bias, wout_bf, bout_row)

    return out2d.reshape(B, N, D)


def mhca_reference(x, w_qkv, scale, w_out, b_out, heads):
    """Pure-JAX f32 reference mirroring the PyTorch forward (dropout p=0)."""
    B, N, D = x.shape
    H = heads
    d = D // H
    qkv = x @ w_qkv                                        # (B, N, 3D)
    q, k, v = jnp.split(qkv, 3, axis=-1)

    def to_heads(t):                                       # 'b n (h d) -> b h n d'
        return t.reshape(B, N, H, d).transpose(0, 2, 1, 3)

    q, k, v = map(to_heads, (q, k, v))
    dots = jnp.einsum('bhnd,bhne->bhde', q, k) * scale.reshape(1, H, 1, 1)
    attn = jax.nn.softmax(dots, axis=-1)
    out = jnp.einsum('bhnd,bhde->bhne', v, attn)           # (B, H, N, d)
    out = out.transpose(0, 2, 1, 3).reshape(B, N, D)       # 'b h n d -> b n (h d)'
    return out @ w_out + b_out


if __name__ == "__main__":
    # Module defaults: dim=128, heads=4 (keeps the lane dim a 128-multiple);
    # small batch / sequence.
    B, N, DIM, HEADS = 2, 8, 128, 4

    key = jax.random.PRNGKey(0)
    k_x, k_qkv, k_out_w, k_out_b = jax.random.split(key, 4)

    x = jax.random.normal(k_x, (B, N, DIM), dtype=jnp.float32)

    # nn.Linear stores (out, in); we keep the pre-transposed (in, out) form
    # so the kernel computes x @ W directly.
    w_qkv = jax.random.normal(k_qkv, (DIM, 3 * DIM), dtype=jnp.float32) * 0.05
    w_out = jax.random.normal(k_out_w, (DIM, DIM), dtype=jnp.float32) * 0.05
    b_out = jax.random.normal(k_out_b, (DIM,), dtype=jnp.float32) * 0.05
    # Distinct per-head scales to exercise the scale-folding path.
    scale = jnp.array([0.5, 1.0, 1.5, 2.0], dtype=jnp.float32)

    y = mhca_pallas(x, w_qkv, scale, w_out, b_out, HEADS)
    y = jax.block_until_ready(y)

    y_ref = mhca_reference(x, w_qkv, scale, w_out, b_out, HEADS)
    assert y.shape == (B, N, DIM)
    # bf16 MXU inputs + approx reciprocal => small drift vs the f32 reference.
    assert jnp.allclose(y, y_ref, atol=2e-2, rtol=2e-2), "mismatch vs reference"

    print("KERNEL_OK")
</pallas_src>

<mosaic_0001>
module attributes {stable_mosaic.version = 11 : i64} {
  func.func @mhca_kernel(%arg0: i32, %arg1: memref<16x128xf32, #tpu.memory_space<vmem>>, %arg2: memref<128x384xbf16, #tpu.memory_space<vmem>>, %arg3: memref<1x128xf32, #tpu.memory_space<vmem>>, %arg4: memref<128x128xf32, #tpu.memory_space<vmem>>, %arg5: memref<128x128xbf16, #tpu.memory_space<vmem>>, %arg6: memref<1x128xf32, #tpu.memory_space<vmem>>, %arg7: memref<16x128xf32, #tpu.memory_space<vmem>>, %arg8: memref<16x128xf32, #tpu.memory_space<vmem>>) attributes {dimension_semantics = [#tpu.dimension_semantics<parallel>], iteration_bounds = array<i64: 1>, scalar_prefetch = 0 : i64, scratch_operands = 1 : i64, tpu.core_type = #tpu.core_type<tc>, window_params = [{transform_indices = @transform_0, window_bounds = array<i64: 16, 128>}, {pipeline_mode = #tpu.pipeline_mode<synchronous>, transform_indices = @transform_1, window_bounds = array<i64: 128, 384>}, {pipeline_mode = #tpu.pipeline_mode<synchronous>, transform_indices = @transform_2, window_bounds = array<i64: 1, 128>}, {pipeline_mode = #tpu.pipeline_mode<synchronous>, transform_indices = @transform_3, window_bounds = array<i64: 128, 128>}, {pipeline_mode = #tpu.pipeline_mode<synchronous>, transform_indices = @transform_4, window_bounds = array<i64: 128, 128>}, {pipeline_mode = #tpu.pipeline_mode<synchronous>, transform_indices = @transform_5, window_bounds = array<i64: 1, 128>}, {transform_indices = @transform_6, window_bounds = array<i64: 16, 128>}]} {
    %c0 = arith.constant 0 : index
    %c0_0 = arith.constant 0 : index
    %0 = vector.load %arg1[%c0, %c0_0] : memref<16x128xf32, #tpu.memory_space<vmem>>, vector<16x128xf32>
    %1 = arith.truncf %0 : vector<16x128xf32> to vector<16x128xbf16>
    %c0_1 = arith.constant 0 : index
    %c0_2 = arith.constant 0 : index
    %2 = vector.load %arg2[%c0_1, %c0_2] : memref<128x384xbf16, #tpu.memory_space<vmem>>, vector<128x384xbf16>
    %cst = arith.constant dense<0.000000e+00> : vector<16x384xf32>
    %3 = tpu.matmul %1, %2, %cst {dimension_numbers = #tpu.dot_dimension_numbers<[1], [0], [0], [1], [0, 0, 1, 1], [], []>} : vector<16x128xbf16>, vector<128x384xbf16>, vector<16x384xf32> -> vector<16x384xf32>
    %4 = vector.extract_strided_slice %3 {offsets = [0, 0], sizes = [16, 128], strides = [1, 1]} : vector<16x384xf32> to vector<16x128xf32>
    %c0_3 = arith.constant 0 : index
    %c0_4 = arith.constant 0 : index
    %5 = vector.load %arg3[%c0_3, %c0_4] : memref<1x128xf32, #tpu.memory_space<vmem>>, vector<1x128xf32>
    %6 = vector.broadcast %5 : vector<1x128xf32> to vector<16x128xf32>
    %7 = arith.mulf %4, %6 : vector<16x128xf32>
    %8 = vector.extract_strided_slice %3 {offsets = [0, 128], sizes = [16, 128], strides = [1, 1]} : vector<16x384xf32> to vector<16x128xf32>
    %9 = vector.extract_strided_slice %3 {offsets = [0, 256], sizes = [16, 128], strides = [1, 1]} : vector<16x384xf32> to vector<16x128xf32>
    %c0_5 = arith.constant 0 : index
    %c0_6 = arith.constant 0 : index
    %10 = vector.load %arg4[%c0_5, %c0_6] : memref<128x128xf32, #tpu.memory_space<vmem>>, vector<128x128xf32>
    %11 = vector.extract_strided_slice %7 {offsets = [0, 0], sizes = [8, 128], strides = [1, 1]} : vector<16x128xf32> to vector<8x128xf32>
    %12 = arith.truncf %11 : vector<8x128xf32> to vector<8x128xbf16>
    %13 = vector.extract_strided_slice %8 {offsets = [0, 0], sizes = [8, 128], strides = [1, 1]} : vector<16x128xf32> to vector<8x128xf32>
    %14 = arith.truncf %13 : vector<8x128xf32> to vector<8x128xbf16>
    %15 = vector.extract_strided_slice %9 {offsets = [0, 0], sizes = [8, 128], strides = [1, 1]} : vector<16x128xf32> to vector<8x128xf32>
    %16 = arith.truncf %15 : vector<8x128xf32> to vector<8x128xbf16>
    %cst_7 = arith.constant dense<0.000000e+00> : vector<128x128xf32>
    %17 = tpu.matmul %12, %14, %cst_7 {dimension_numbers = #tpu.dot_dimension_numbers<[0], [0], [1], [1], [0, 1, 1, 1], [], []>} : vector<8x128xbf16>, vector<8x128xbf16>, vector<128x128xf32> -> vector<128x128xf32>
    %18 = arith.addf %17, %10 : vector<128x128xf32>
    %cst_8 = arith.constant dense<0xFF800000> : vector<128xf32>
    %19 = vector.multi_reduction <maximumf>, %18, %cst_8 [1] : vector<128x128xf32> to vector<128xf32>
    %20 = vector.shape_cast %19 : vector<128xf32> to vector<128x1xf32>
    %21 = vector.broadcast %20 : vector<128x1xf32> to vector<128x128xf32>
    %22 = arith.subf %18, %21 : vector<128x128xf32>
    %23 = math.exp %22 : vector<128x128xf32>
    %cst_9 = arith.constant dense<0.000000e+00> : vector<128xf32>
    %24 = vector.multi_reduction <add>, %23, %cst_9 [1] : vector<128x128xf32> to vector<128xf32>
    %25 = vector.shape_cast %24 : vector<128xf32> to vector<128x1xf32>
    %26 = tpu.reciprocal %25 {approx = true} : vector<128x1xf32> -> vector<128x1xf32>
    %27 = vector.broadcast %26 : vector<128x1xf32> to vector<128x128xf32>
    %28 = arith.mulf %23, %27 : vector<128x128xf32>
    %29 = arith.truncf %28 : vector<128x128xf32> to vector<128x128xbf16>
    %cst_10 = arith.constant dense<0.000000e+00> : vector<8x128xf32>
    %30 = tpu.matmul %16, %29, %cst_10 {dimension_numbers = #tpu.dot_dimension_numbers<[1], [0], [0], [1], [0, 0, 1, 1], [], []>} : vector<8x128xbf16>, vector<128x128xbf16>, vector<8x128xf32> -> vector<8x128xf32>
    %c0_11 = arith.constant 0 : index
    %c0_12 = arith.constant 0 : index
    %31 = vector.load %arg8[%c0_11, %c0_12] : memref<16x128xf32, #tpu.memory_space<vmem>>, vector<8x128xf32>
    tpu.vector_store %arg8[%c0_11, %c0_12], %30 {strides = array<i32>} : memref<16x128xf32, #tpu.memory_space<vmem>>, vector<8x128xf32>,
    %32 = vector.extract_strided_slice %7 {offsets = [8, 0], sizes = [8, 128], strides = [1, 1]} : vector<16x128xf32> to vector<8x128xf32>
    %33 = arith.truncf %32 : vector<8x128xf32> to vector<8x128xbf16>
    %34 = vector.extract_strided_slice %8 {offsets = [8, 0], sizes = [8, 128], strides = [1, 1]} : vector<16x128xf32> to vector<8x128xf32>
    %35 = arith.truncf %34 : vector<8x128xf32> to vector<8x128xbf16>
    %36 = vector.extract_strided_slice %9 {offsets = [8, 0], sizes = [8, 128], strides = [1, 1]} : vector<16x128xf32> to vector<8x128xf32>
    %37 = arith.truncf %36 : vector<8x128xf32> to vector<8x128xbf16>
    %cst_13 = arith.constant dense<0.000000e+00> : vector<128x128xf32>
    %38 = tpu.matmul %33, %35, %cst_13 {dimension_numbers = #tpu.dot_dimension_numbers<[0], [0], [1], [1], [0, 1, 1, 1], [], []>} : vector<8x128xbf16>, vector<8x128xbf16>, vector<128x128xf32> -> vector<128x128xf32>
    %39 = arith.addf %38, %10 : vector<128x128xf32>
    %cst_14 = arith.constant dense<0xFF800000> : vector<128xf32>
    %40 = vector.multi_reduction <maximumf>, %39, %cst_14 [1] : vector<128x128xf32> to vector<128xf32>
    %41 = vector.shape_cast %40 : vector<128xf32> to vector<128x1xf32>
    %42 = vector.broadcast %41 : vector<128x1xf32> to vector<128x128xf32>
    %43 = arith.subf %39, %42 : vector<128x128xf32>
    %44 = math.exp %43 : vector<128x128xf32>
    %cst_15 = arith.constant dense<0.000000e+00> : vector<128xf32>
    %45 = vector.multi_reduction <add>, %44, %cst_15 [1] : vector<128x128xf32> to vector<128xf32>
    %46 = vector.shape_cast %45 : vector<128xf32> to vector<128x1xf32>
    %47 = tpu.reciprocal %46 {approx = true} : vector<128x1xf32> -> vector<128x1xf32>
    %48 = vector.broadcast %47 : vector<128x1xf32> to vector<128x128xf32>
    %49 = arith.mulf %44, %48 : vector<128x128xf32>
    %50 = arith.truncf %49 : vector<128x128xf32> to vector<128x128xbf16>
    %cst_16 = arith.constant dense<0.000000e+00> : vector<8x128xf32>
    %51 = tpu.matmul %37, %50, %cst_16 {dimension_numbers = #tpu.dot_dimension_numbers<[1], [0], [0], [1], [0, 0, 1, 1], [], []>} : vector<8x128xbf16>, vector<128x128xbf16>, vector<8x128xf32> -> vector<8x128xf32>
    %c8 = arith.constant 8 : index
    %c0_17 = arith.constant 0 : index
    %52 = vector.load %arg8[%c8, %c0_17] : memref<16x128xf32, #tpu.memory_space<vmem>>, vector<8x128xf32>
    tpu.vector_store %arg8[%c8, %c0_17], %51 {strides = array<i32>} : memref<16x128xf32, #tpu.memory_space<vmem>>, vector<8x128xf32>,
    %c0_18 = arith.constant 0 : index
    %c0_19 = arith.constant 0 : index
    %53 = vector.load %arg8[%c0_18, %c0_19] : memref<16x128xf32, #tpu.memory_space<vmem>>, vector<16x128xf32>
    %54 = arith.truncf %53 : vector<16x128xf32> to vector<16x128xbf16>
    %c0_20 = arith.constant 0 : index
    %c0_21 = arith.constant 0 : index
    %55 = vector.load %arg5[%c0_20, %c0_21] : memref<128x128xbf16, #tpu.memory_space<vmem>>, vector<128x128xbf16>
    %cst_22 = arith.constant dense<0.000000e+00> : vector<16x128xf32>
    %56 = tpu.matmul %54, %55, %cst_22 {dimension_numbers = #tpu.dot_dimension_numbers<[1], [0], [0], [1], [0, 0, 1, 1], [], []>} : vector<16x128xbf16>, vector<128x128xbf16>, vector<16x128xf32> -> vector<16x128xf32>
    %c0_23 = arith.constant 0 : index
    %c0_24 = arith.constant 0 : index
    %57 = vector.load %arg6[%c0_23, %c0_24] : memref<1x128xf32, #tpu.memory_space<vmem>>, vector<1x128xf32>
    %58 = vector.broadcast %57 : vector<1x128xf32> to vector<16x128xf32>
    %59 = arith.addf %56, %58 : vector<16x128xf32>
    %c0_25 = arith.constant 0 : index
    %c0_26 = arith.constant 0 : index
    %60 = vector.load %arg7[%c0_25, %c0_26] : memref<16x128xf32, #tpu.memory_space<vmem>>, vector<16x128xf32>
    tpu.vector_store %arg7[%c0_25, %c0_26], %59 {strides = array<i32>} : memref<16x128xf32, #tpu.memory_space<vmem>>, vector<16x128xf32>,
    return
  }
  func.func @transform_0(%arg0: i32) -> (i32, i32) {
    %c0_i32 = arith.constant 0 : i32
    %c0_i32_0 = arith.constant 0 : i32
    return %arg0, %c0_i32 : i32, i32
  }
  func.func @transform_1(%arg0: i32) -> (i32, i32) {
    %c0_i32 = arith.constant 0 : i32
    %c0_i32_0 = arith.constant 0 : i32
    %c0_i32_1 = arith.constant 0 : i32
    return %c0_i32, %c0_i32_0 : i32, i32
  }
  func.func @transform_2(%arg0: i32) -> (i32, i32) {
    %c0_i32 = arith.constant 0 : i32
    %c0_i32_0 = arith.constant 0 : i32
    %c0_i32_1 = arith.constant 0 : i32
    return %c0_i32, %c0_i32_0 : i32, i32
  }
  func.func @transform_3(%arg0: i32) -> (i32, i32) {
    %c0_i32 = arith.constant 0 : i32
    %c0_i32_0 = arith.constant 0 : i32
    %c0_i32_1 = arith.constant 0 : i32
    return %c0_i32, %c0_i32_0 : i32, i32
  }
  func.func @transform_4(%arg0: i32) -> (i32, i32) {
    %c0_i32 = arith.constant 0 : i32
    %c0_i32_0 = arith.constant 0 : i32
    %c0_i32_1 = arith.constant 0 : i32
    return %c0_i32, %c0_i32_0 : i32, i32
  }
  func.func @transform_5(%arg0: i32) -> (i32, i32) {
    %c0_i32 = arith.constant 0 : i32
    %c0_i32_0 = arith.constant 0 : i32
    %c0_i32_1 = arith.constant 0 : i32
    return %c0_i32, %c0_i32_0 : i32, i32
  }
  func.func @transform_6(%arg0: i32) -> (i32, i32) {
    %c0_i32 = arith.constant 0 : i32
    %c0_i32_0 = arith.constant 0 : i32
    return %arg0, %c0_i32 : i32, i32
  }
}

</mosaic_0001>

<llo_original>
// kernel: tpu_custom_call.1
$region0: #{tpu_custom_call.1}
  #allocation0 [shape = 'u32[]', space=smem, size = 0x4, offset = 0x4, fixed_abs, tag = 'smem constant byte address 0x4 - core index']
  #allocation1 [shape = 'u32[144,128]{1,0:T(1,128)}', space=vmem, size = 0x12000, scoped, tag = 'internal scratch']
  #allocation2 [shape = 'f32[16,128]{1,0:T(8,128)}', space=vmem, size = 0x2000, scoped, tag = 'scratch operand']
  %s0 = inlined_call_operand.hbm [shape: f32[16,128], index: 0, kind: input, shape index: {}]
  %s1 = inlined_call_operand.hbm [shape: bf16[128,384], index: 1, kind: input, shape index: {}]
  %s2 = inlined_call_operand.hbm [shape: f32[1,128], index: 2, kind: input, shape index: {}]
  %s3 = inlined_call_operand.hbm [shape: f32[128,128], index: 3, kind: input, shape index: {}]
  %s4 = inlined_call_operand.hbm [shape: bf16[128,128], index: 4, kind: input, shape index: {}]
  %s5 = inlined_call_operand.hbm [shape: f32[1,128], index: 5, kind: input, shape index: {}]
  %s6 = inlined_call_operand.hbm [shape: f32[16,128], index: 6, kind: output, shape index: {}]
  %s7 = sld [smem:[#allocation0]]
  $region58: #{tpu_custom_call.1} parent=0
    _
  %s9 = ssub.s32 1, %s7
  %s10 = scalar_select 0, %s9, %s7
  $region1: #{tpu_custom_call.1} parent=0
    #allocation3 [shape = 'u8[8192]{0}', space=vmem, size = 0x2000, scoped, tag = 'input window, operand 0, single buffered']
    #allocation4 [shape = 's32[1]{0}', space=sflag, size = 0x4, scoped, tag = 'scoped memory for tpu_custom_call.1']
    #allocation5 [shape = 's32[1]{0}', space=sflag, size = 0x4, scoped, tag = 'scoped memory for tpu_custom_call.1']
    #allocation6 [shape = 'u8[98304]{0}', space=vmem, size = 0x18000, scoped, tag = 'input window, operand 1, single buffered']
    #allocation7 [shape = 's32[1]{0}', space=sflag, size = 0x4, scoped, tag = 'scoped memory for tpu_custom_call.1']
    #allocation8 [shape = 'u8[512]{0}', space=vmem, size = 0x400, scoped, tag = 'input window, operand 2, single buffered']
    #allocation9 [shape = 'u8[65536]{0}', space=vmem, size = 0x10000, scoped, tag = 'input window, operand 3, single buffered']
    #allocation10 [shape = 's32[1]{0}', space=sflag, size = 0x4, scoped, tag = 'scoped memory for tpu_custom_call.1']
    #allocation11 [shape = 'u8[32768]{0}', space=vmem, size = 0x8000, scoped, tag = 'input window, operand 4, single buffered']
    #allocation12 [shape = 'u8[512]{0}', space=vmem, size = 0x400, scoped, tag = 'input window, operand 5, single buffered']
    #allocation13 [shape = 's32[1]{0}', space=sflag, size = 0x4, scoped, tag = 'scoped memory for tpu_custom_call.1']
    #allocation14 [shape = 'u8[8192]{0}', space=vmem, size = 0x2000, scoped, tag = 'output window, operand 0, single buffered']
    %11 = vsyncpa [#allocation4], 0
    %12 = vsyncpa [#allocation7], 0
    %13 = vsyncpa [#allocation10], 0
    %14 = vsyncpa [#allocation13], 0
    %15 = vsyncpa [#allocation5], 0
    // Predicated region
    $region2: #{tpu_custom_call.1} parent=1 // pred_check
      _
    $region3: #{tpu_custom_call.1} parent=1 // pred_check_branch
      %17 = sbr.rel (0) target = $region5
    $region4: #{tpu_custom_call.1} parent=1 // pred_region
      %s19 = ssub.s32 256, 256
      %20 = vsyncadd [#allocation4], %s19
      %s21 = sshll.u32 [#allocation3], 4
      %s22 = int_to_ptr.vmem [resolvable:$true] %s21
      %27 = dma.hbm_to_vmem [thread:$0]  %s0, 256, %s22, [#allocation4], 128, 128, 8
    $region5: #{tpu_custom_call.1} parent=1 // pred_fallthru
      _
    // Predicated region
    $region6: #{tpu_custom_call.1} parent=1 // pred_check
      _
    $region7: #{tpu_custom_call.1} parent=1 // pred_check_branch
      %29 = sbr.rel (0) target = $region9
    $region8: #{tpu_custom_call.1} parent=1 // pred_region
      %s31 = ssub.s32 3072, 3072
      %32 = vsyncadd [#allocation7], %s31
      %s33 = sshll.u32 [#allocation6], 4
      %s34 = int_to_ptr.vmem [resolvable:$true] %s33
      %39 = dma.hbm_to_vmem [thread:$0]  %s1, 3072, %s34, [#allocation7], 192, 192, 12
    $region9: #{tpu_custom_call.1} parent=1 // pred_fallthru
      _
    // Predicated region
    $region10: #{tpu_custom_call.1} parent=1 // pred_check
      _
    $region11: #{tpu_custom_call.1} parent=1 // pred_check_branch
      %41 = sbr.rel (0) target = $region13
    $region12: #{tpu_custom_call.1} parent=1 // pred_region
      %s43 = ssub.s32 16, 16
      %44 = vsyncadd [#allocation7], %s43
      %s46 = sshll.u32 [#allocation8], 4
      %s47 = int_to_ptr.vmem [resolvable:$true] %s46
      %49 = dma.hbm_to_vmem [thread:$0]  %s2, 16, %s47, [#allocation7]
    $region13: #{tpu_custom_call.1} parent=1 // pred_fallthru
      _
    // Predicated region
    $region14: #{tpu_custom_call.1} parent=1 // pred_check
      _
    $region15: #{tpu_custom_call.1} parent=1 // pred_check_branch
      %51 = sbr.rel (0) target = $region17
    $region16: #{tpu_custom_call.1} parent=1 // pred_region
      %s53 = ssub.s32 2048, 2048
      %54 = vsyncadd [#allocation10], %s53
      %s55 = sshll.u32 [#allocation9], 4
      %s56 = int_to_ptr.vmem [resolvable:$true] %s55
      %61 = dma.hbm_to_vmem [thread:$0]  %s3, 2048, %s56, [#allocation10], 128, 128, 8
    $region17: #{tpu_custom_call.1} parent=1 // pred_fallthru
      _
    // Predicated region
    $region18: #{tpu_custom_call.1} parent=1 // pred_check
      _
    $region19: #{tpu_custom_call.1} parent=1 // pred_check_branch
      %63 = sbr.rel (0) target = $region21
    $region20: #{tpu_custom_call.1} parent=1 // pred_region
      %s65 = ssub.s32 1024, 1024
      %66 = vsyncadd [#allocation10], %s65
      %s67 = sshll.u32 [#allocation11], 4
      %s68 = int_to_ptr.vmem [resolvable:$true] %s67
      %73 = dma.hbm_to_vmem [thread:$0]  %s4, 1024, %s68, [#allocation10], 64, 64, 4
    $region21: #{tpu_custom_call.1} parent=1 // pred_fallthru
      _
    // Predicated region
    $region22: #{tpu_custom_call.1} parent=1 // pred_check
      _
    $region23: #{tpu_custom_call.1} parent=1 // pred_check_branch
      %75 = sbr.rel (0) target = $region25
    $region24: #{tpu_custom_call.1} parent=1 // pred_region
      %s77 = ssub.s32 16, 16
      %78 = vsyncadd [#allocation13], %s77
      %s80 = sshll.u32 [#allocation12], 4
      %s81 = int_to_ptr.vmem [resolvable:$true] %s80
      %83 = dma.hbm_to_vmem [thread:$0]  %s5, 16, %s81, [#allocation13]
    $region25: #{tpu_custom_call.1} parent=1 // pred_fallthru
      _
    // Predicated region
    $region26: #{tpu_custom_call.1} parent=1 // pred_check
      _
    $region27: #{tpu_custom_call.1} parent=1 // pred_check_branch
      %85 = sbr.rel (0) target = $region29
    $region28: #{tpu_custom_call.1} parent=1 // pred_region
      %86 = dma.done [#allocation4], 256
    $region29: #{tpu_custom_call.1} parent=1 // pred_fallthru
      _
    // Predicated region
    $region30: #{tpu_custom_call.1} parent=1 // pred_check
      _
    $region31: #{tpu_custom_call.1} parent=1 // pred_check_branch
      %88 = sbr.rel (0) target = $region33
    $region32: #{tpu_custom_call.1} parent=1 // pred_region
      %89 = dma.done [#allocation7], 3072
    $region33: #{tpu_custom_call.1} parent=1 // pred_fallthru
      _
    // Predicated region
    $region34: #{tpu_custom_call.1} parent=1 // pred_check
      _
    $region35: #{tpu_custom_call.1} parent=1 // pred_check_branch
      %91 = sbr.rel (0) target = $region37
    $region36: #{tpu_custom_call.1} parent=1 // pred_region
      %92 = dma.done [#allocation7], 16
    $region37: #{tpu_custom_call.1} parent=1 // pred_fallthru
      _
    // Predicated region
    $region38: #{tpu_custom_call.1} parent=1 // pred_check
      _
    $region39: #{tpu_custom_call.1} parent=1 // pred_check_branch
      %94 = sbr.rel (0) target = $region41
    $region40: #{tpu_custom_call.1} parent=1 // pred_region
      %95 = dma.done [#allocation10], 2048
    $region41: #{tpu_custom_call.1} parent=1 // pred_fallthru
      _
    // Predicated region
    $region42: #{tpu_custom_call.1} parent=1 // pred_check
      _
    $region43: #{tpu_custom_call.1} parent=1 // pred_check_branch
      %97 = sbr.rel (0) target = $region45
    $region44: #{tpu_custom_call.1} parent=1 // pred_region
      %98 = dma.done [#allocation10], 1024
    $region45: #{tpu_custom_call.1} parent=1 // pred_fallthru
      _
    // Predicated region
    $region46: #{tpu_custom_call.1} parent=1 // pred_check
      _
    $region47: #{tpu_custom_call.1} parent=1 // pred_check_branch
      %100 = sbr.rel (0) target = $region49
    $region48: #{tpu_custom_call.1} parent=1 // pred_region
      %101 = dma.done [#allocation13], 16
    $region49: #{tpu_custom_call.1} parent=1 // pred_fallthru
      _
    %v103 = vld [vmem:[#allocation3] sm:$0xff]
    %v104 = vld [vmem:[#allocation3 + $0x8] sm:$0xff]
    %v105 = vpack.c.bf16 %v104, %v103
    %v106 = vld [vmem:[#allocation6] sm:$0xff]
    %v107 = vld [vmem:[#allocation6 + $0x8] sm:$0xf]
    %v108 = vld [vmem:[#allocation6 + $0xc] sm:$0xff]
    %v109 = vld [vmem:[#allocation6 + $0x14] sm:$0xf]
    %v110 = vld [vmem:[#allocation6 + $0x18] sm:$0xff]
    %v111 = vld [vmem:[#allocation6 + $0x20] sm:$0xf]
    %v112 = vld [vmem:[#allocation6 + $0x24] sm:$0xff]
    %v113 = vld [vmem:[#allocation6 + $0x2c] sm:$0xf]
    %v114 = vld [vmem:[#allocation6 + $0x30] sm:$0xff]
    %v115 = vld [vmem:[#allocation6 + $0x38] sm:$0xf]
    %v116 = vld [vmem:[#allocation6 + $0x3c] sm:$0xff]
    %v117 = vld [vmem:[#allocation6 + $0x44] sm:$0xf]
    %v118 = vld [vmem:[#allocation6 + $0x48] sm:$0xff]
    %v119 = vld [vmem:[#allocation6 + $0x50] sm:$0xf]
    %v120 = vld [vmem:[#allocation6 + $0x54] sm:$0xff]
    %v121 = vld [vmem:[#allocation6 + $0x5c] sm:$0xf]
    %v122 = vld [vmem:[#allocation6 + $0x60] sm:$0xff]
    %v123 = vld [vmem:[#allocation6 + $0x68] sm:$0xf]
    %v124 = vld [vmem:[#allocation6 + $0x6c] sm:$0xff]
    %v125 = vld [vmem:[#allocation6 + $0x74] sm:$0xf]
    %v126 = vld [vmem:[#allocation6 + $0x78] sm:$0xff]
    %v127 = vld [vmem:[#allocation6 + $0x80] sm:$0xf]
    %v128 = vld [vmem:[#allocation6 + $0x84] sm:$0xff]
    %v129 = vld [vmem:[#allocation6 + $0x8c] sm:$0xf]
    %v130 = vld [vmem:[#allocation6 + $0x90] sm:$0xff]
    %v131 = vld [vmem:[#allocation6 + $0x98] sm:$0xf]
    %v132 = vld [vmem:[#allocation6 + $0x9c] sm:$0xff]
    %v133 = vld [vmem:[#allocation6 + $0xa4] sm:$0xf]
    %v134 = vld [vmem:[#allocation6 + $0xa8] sm:$0xff]
    %v135 = vld [vmem:[#allocation6 + $0xb0] sm:$0xf]
    %v136 = vld [vmem:[#allocation6 + $0xb4] sm:$0xff]
    %v137 = vld [vmem:[#allocation6 + $0xbc] sm:$0xf]
    %v170 = vunpack.c.l.b16 %v106
    %v171 = vunpack.c.h.b16 %v106
    %v172 = vunpack.c.l.b16 %v107
    %v173 = vunpack.c.l.b16 %v108
    %v174 = vunpack.c.h.b16 %v108
    %v175 = vunpack.c.l.b16 %v109
    %v176 = vunpack.c.l.b16 %v110
    %v177 = vunpack.c.h.b16 %v110
    %v178 = vunpack.c.l.b16 %v111
    %v179 = vunpack.c.l.b16 %v112
    %v180 = vunpack.c.h.b16 %v112
    %v181 = vunpack.c.l.b16 %v113
    %v182 = vunpack.c.l.b16 %v114
    %v183 = vunpack.c.h.b16 %v114
    %v184 = vunpack.c.l.b16 %v115
    %v185 = vunpack.c.l.b16 %v116
    %v186 = vunpack.c.h.b16 %v116
    %v187 = vunpack.c.l.b16 %v117
    %v188 = vunpack.c.l.b16 %v118
    %v189 = vunpack.c.h.b16 %v118
    %v190 = vunpack.c.l.b16 %v119
    %v191 = vunpack.c.l.b16 %v120
    %v192 = vunpack.c.h.b16 %v120
    %v193 = vunpack.c.l.b16 %v121
    %v194 = vunpack.c.l.b16 %v122
    %v195 = vunpack.c.h.b16 %v122
    %v196 = vunpack.c.l.b16 %v123
    %v197 = vunpack.c.l.b16 %v124
    %v198 = vunpack.c.h.b16 %v124
    %v199 = vunpack.c.l.b16 %v125
    %v200 = vunpack.c.l.b16 %v126
    %v201 = vunpack.c.h.b16 %v126
    %v202 = vunpack.c.l.b16 %v127
    %v203 = vunpack.c.l.b16 %v128
    %v204 = vunpack.c.h.b16 %v128
    %v205 = vunpack.c.l.b16 %v129
    %v206 = vunpack.c.l.b16 %v130
    %v207 = vunpack.c.h.b16 %v130
    %v208 = vunpack.c.l.b16 %v131
    %v209 = vunpack.c.l.b16 %v132
    %v210 = vunpack.c.h.b16 %v132
    %v211 = vunpack.c.l.b16 %v133
    %v212 = vunpack.c.l.b16 %v134
    %v213 = vunpack.c.h.b16 %v134
    %v214 = vunpack.c.l.b16 %v135
    %v215 = vunpack.c.l.b16 %v136
    %v216 = vunpack.c.h.b16 %v136
    %v217 = vunpack.c.l.b16 %v137
    %v218 = vpack.c.b16 %v173, %v170
    %v219 = vpack.c.b16 %v174, %v171
    %v220 = vpack.c.b16 %v175, %v172
    %v221 = vpack.c.b16 %v179, %v176
    %v222 = vpack.c.b16 %v180, %v177
    %v223 = vpack.c.b16 %v181, %v178
    %v224 = vpack.c.b16 %v185, %v182
    %v225 = vpack.c.b16 %v186, %v183
    %v226 = vpack.c.b16 %v187, %v184
    %v227 = vpack.c.b16 %v191, %v188
    %v228 = vpack.c.b16 %v192, %v189
    %v229 = vpack.c.b16 %v193, %v190
    %v230 = vpack.c.b16 %v197, %v194
    %v231 = vpack.c.b16 %v198, %v195
    %v232 = vpack.c.b16 %v199, %v196
    %v233 = vpack.c.b16 %v203, %v200
    %v234 = vpack.c.b16 %v204, %v201
    %v235 = vpack.c.b16 %v205, %v202
    %v236 = vpack.c.b16 %v209, %v206
    %v237 = vpack.c.b16 %v210, %v207
    %v238 = vpack.c.b16 %v211, %v208
    %v239 = vpack.c.b16 %v215, %v212
    %v240 = vpack.c.b16 %v216, %v213
    %v241 = vpack.c.b16 %v217, %v214
    %266 = vmatprep.subr.bf16.mxu0 %v219
    %267 = vmatpush1.bf16.msra.mxu0 %v218
    %268 = vmatprep.subr.bf16.mxu0 %v222
    %269 = vmatpush1.bf16.msra.mxu0 %v221
    %270 = vmatprep.subr.bf16.mxu0 %v225
    %271 = vmatpush1.bf16.msra.mxu0 %v224
    %272 = vmatprep.subr.bf16.mxu0 %v228
    %273 = vmatpush1.bf16.msra.mxu0 %v227
    %274 = vmatprep.subr.bf16.mxu0 %v231
    %275 = vmatpush1.bf16.msra.mxu0 %v230
    %276 = vmatprep.subr.bf16.mxu0 %v234
    %277 = vmatpush1.bf16.msra.mxu0 %v233
    %278 = vmatprep.subr.bf16.mxu0 %v237
    %279 = vmatpush1.bf16.msra.mxu0 %v236
    %280 = vmatprep.subr.bf16.mxu0 %v240
    %281 = vmatpush1.bf16.msra.mxu0 %v239
    %282 = vmatprep.subr.bf16.mxu0 0
    %283 = vmatpush1.bf16.msra.mxu0 0
    %284 = vmatprep.subr.bf16.mxu0 0
    %285 = vmatpush1.bf16.msra.mxu0 0
    %286 = vmatprep.subr.bf16.mxu0 0
    %287 = vmatpush1.bf16.msra.mxu0 0
    %288 = vmatprep.subr.bf16.mxu0 0
    %289 = vmatpush1.bf16.msra.mxu0 0
    %290 = vmatprep.subr.bf16.mxu0 0
    %291 = vmatpush1.bf16.msra.mxu0 0
    %292 = vmatprep.subr.bf16.mxu0 0
    %293 = vmatpush1.bf16.msra.mxu0 0
    %294 = vmatprep.subr.bf16.mxu0 0
    %295 = vmatpush1.bf16.msra.mxu0 0
    %296 = vmatprep.subr.bf16.mxu0 0
    %297 = vmatpush1.bf16.msra.mxu0 0
    %298 = vmatprep.mubr.bf16.mxu0 0
    %299 = vmatmul.mubr.bf16.gmra.mrb[0].mxu0 %v105
    %v300 = vpop.f32.mrb[0].mxu0
    %v301 = vadd.f32 0.0, %v300
    %v302 = vpop.f32.mrb[0].mxu0
    %v303 = vadd.f32 0.0, %v302
    %v304 = vpop.f32.mrb[0].mxu0
    %v305 = vadd.f32 0.0, %v304
    %v306 = vpop.f32.mrb[0].mxu0
    %v307 = vadd.f32 0.0, %v306
    %308 = vdwg.mxu0
    %309 = vmatprep.subr.bf16.mxu0 0
    %310 = vmatpush1.bf16.msra.mxu0 %v220
    %311 = vmatprep.subr.bf16.mxu0 0
    %312 = vmatpush1.bf16.msra.mxu0 %v223
    %313 = vmatprep.subr.bf16.mxu0 0
    %314 = vmatpush1.bf16.msra.mxu0 %v226
    %315 = vmatprep.subr.bf16.mxu0 0
    %316 = vmatpush1.bf16.msra.mxu0 %v229
    %317 = vmatprep.subr.bf16.mxu0 0
    %318 = vmatpush1.bf16.msra.mxu0 %v232
    %319 = vmatprep.subr.bf16.mxu0 0
    %320 = vmatpush1.bf16.msra.mxu0 %v235
    %321 = vmatprep.subr.bf16.mxu0 0
    %322 = vmatpush1.bf16.msra.mxu0 %v238
    %323 = vmatprep.subr.bf16.mxu0 0
    %324 = vmatpush1.bf16.msra.mxu0 %v241
    %325 = vmatprep.subr.bf16.mxu0 0
    %326 = vmatpush1.bf16.msra.mxu0 0
    %327 = vmatprep.subr.bf16.mxu0 0
    %328 = vmatpush1.bf16.msra.mxu0 0
    %329 = vmatprep.subr.bf16.mxu0 0
    %330 = vmatpush1.bf16.msra.mxu0 0
    %331 = vmatprep.subr.bf16.mxu0 0
    %332 = vmatpush1.bf16.msra.mxu0 0
    %333 = vmatprep.subr.bf16.mxu0 0
    %334 = vmatpush1.bf16.msra.mxu0 0
    %335 = vmatprep.subr.bf16.mxu0 0
    %336 = vmatpush1.bf16.msra.mxu0 0
    %337 = vmatprep.subr.bf16.mxu0 0
    %338 = vmatpush1.bf16.msra.mxu0 0
    %339 = vmatprep.subr.bf16.mxu0 0
    %340 = vmatpush1.bf16.msra.mxu0 0
    %341 = vmatprep.mubr.bf16.mxu0 0
    %342 = vmatmul.mubr.bf16.gmra.mrb[0].mxu0 %v105
    %v343 = vpop.f32.mrb[0].mxu0
    %v344 = vadd.f32 0.0, %v343
    %v345 = vpop.f32.mrb[0].mxu0
    %v346 = vpop.f32.mrb[0].mxu0
    %v347 = vadd.f32 0.0, %v346
    %v348 = vpop.f32.mrb[0].mxu0
    %349 = vdwg.mxu0
    %v350 = vld [vmem:[#allocation8] sm:$0x1]
    %v352 = vlaneseq
    %v353 = vshrl.u32 %v352, 7
    %v354 = vsub.s32 0, %v353
    %v355 = vrot.slane %v350, %v354
    %v357 = vmul.f32 %v301, %v355
    %v358 = vmul.f32 %v305, %v355
    %v359 = vld [vmem:[#allocation9] sm:$0xff]
    %v360 = vld [vmem:[#allocation9 + $0x8] sm:$0xff]
    %v361 = vld [vmem:[#allocation9 + $0x10] sm:$0xff]
    %v362 = vld [vmem:[#allocation9 + $0x18] sm:$0xff]
    %v363 = vld [vmem:[#allocation9 + $0x20] sm:$0xff]
    %v364 = vld [vmem:[#allocation9 + $0x28] sm:$0xff]
    %v365 = vld [vmem:[#allocation9 + $0x30] sm:$0xff]
    %v366 = vld [vmem:[#allocation9 + $0x38] sm:$0xff]
    %v367 = vld [vmem:[#allocation9 + $0x40] sm:$0xff]
    %v368 = vld [vmem:[#allocation9 + $0x48] sm:$0xff]
    %v369 = vld [vmem:[#allocation9 + $0x50] sm:$0xff]
    %v370 = vld [vmem:[#allocation9 + $0x58] sm:$0xff]
    %v371 = vld [vmem:[#allocation9 + $0x60] sm:$0xff]
    %v372 = vld [vmem:[#allocation9 + $0x68] sm:$0xff]
    %v373 = vld [vmem:[#allocation9 + $0x70] sm:$0xff]
    %v374 = vld [vmem:[#allocation9 + $0x78] sm:$0xff]
    %v375 = vpack.c.bf16 %v357, %v357
    %v376 = vpack.c.bf16 %v303, %v303
    %v377 = vpack.c.bf16 %v344, %v344
    %378 = vxpose.xlu0.c.b16.start [1/8] %v375, 128
    %379 = vxpose.xlu0.c.b16.cont [2/8] 0, 128
    %380 = vxpose.xlu0.c.b16.cont [3/8] 0, 128
    %381 = vxpose.xlu0.c.b16.cont [4/8] 0, 128
    %382 = vxpose.xlu0.c.b16.cont [5/8] 0, 128
    %383 = vxpose.xlu0.c.b16.cont [6/8] 0, 128
    %384 = vxpose.xlu0.c.b16.cont [7/8] 0, 128
    %385 = vxpose.xlu0.c.b16.end [8/8] 0, 128
    %v386 = vpop.trf.xlu0
    %v387 = vpop.trf.xlu0
    %v388 = vpop.trf.xlu0
    %v389 = vpop.trf.xlu0
    %v390 = vpop.trf.xlu0
    %v391 = vpop.trf.xlu0
    %v392 = vpop.trf.xlu0
    %v393 = vpop.trf.xlu0
    %vm394 = vcmask 64512
    %v396 = vsel %vm394, %v386, 0
    %v399 = vsel %vm394, %v387, 0
    %v402 = vsel %vm394, %v388, 0
    %v405 = vsel %vm394, %v389, 0
    %v408 = vsel %vm394, %v390, 0
    %v411 = vsel %vm394, %v391, 0
    %v414 = vsel %vm394, %v392, 0
    %v417 = vsel %vm394, %v393, 0
    %vm419 = vcmask 1043456
    %v421 = vsel %vm419, %v376, 0
    %423 = vmatprep.subr.bf16.mxu0 0
    %424 = vmatpush1.bf16.msra.mxu0 %v421
    %425 = vmatprep.subr.bf16.mxu0 0
    %426 = vmatpush1.bf16.msra.mxu0 0
    %427 = vmatprep.subr.bf16.mxu0 0
    %428 = vmatpush1.bf16.msra.mxu0 0
    %429 = vmatprep.subr.bf16.mxu0 0
    %430 = vmatpush1.bf16.msra.mxu0 0
    %431 = vmatprep.subr.bf16.mxu0 0
    %432 = vmatpush1.bf16.msra.mxu0 0
    %433 = vmatprep.subr.bf16.mxu0 0
    %434 = vmatpush1.bf16.msra.mxu0 0
    %435 = vmatprep.subr.bf16.mxu0 0
    %436 = vmatpush1.bf16.msra.mxu0 0
    %437 = vmatprep.subr.bf16.mxu0 0
    %438 = vmatpush1.bf16.msra.mxu0 0
    %439 = vmatprep.subr.bf16.mxu0 0
    %440 = vmatpush1.bf16.msra.mxu0 0
    %441 = vmatprep.subr.bf16.mxu0 0
    %442 = vmatpush1.bf16.msra.mxu0 0
    %443 = vmatprep.subr.bf16.mxu0 0
    %444 = vmatpush1.bf16.msra.mxu0 0
    %445 = vmatprep.subr.bf16.mxu0 0
    %446 = vmatpush1.bf16.msra.mxu0 0
    %447 = vmatprep.subr.bf16.mxu0 0
    %448 = vmatpush1.bf16.msra.mxu0 0
    %449 = vmatprep.subr.bf16.mxu0 0
    %450 = vmatpush1.bf16.msra.mxu0 0
    %451 = vmatprep.subr.bf16.mxu0 0
    %452 = vmatpush1.bf16.msra.mxu0 0
    %453 = vmatprep.subr.bf16.mxu0 0
    %454 = vmatpush1.bf16.msra.mxu0 0
    %455 = vmatprep.mubr.bf16.mxu0 0
    %456 = vmatmul.mubr.bf16.gmra.mrb[0].mxu0 %v396
    %v457 = vpop.f32.mrb[0].mxu0
    %v458 = vadd.f32 %v359, %v457
    %v459 = vpop.f32.mrb[0].mxu0
    %v460 = vpop.f32.mrb[0].mxu0
    %v461 = vadd.f32 %v360, %v460
    %v462 = vpop.f32.mrb[0].mxu0
    %463 = vmatprep.mubr.bf16.mxu0 0
    %464 = vmatmul.mubr.bf16.gmra.mrb[0].mxu0 %v399
    %v465 = vpop.f32.mrb[0].mxu0
    %v466 = vadd.f32 %v361, %v465
    %v467 = vpop.f32.mrb[0].mxu0
    %v468 = vpop.f32.mrb[0].mxu0
    %v469 = vadd.f32 %v362, %v468
    %v470 = vpop.f32.mrb[0].mxu0
    %471 = vmatprep.mubr.bf16.mxu0 0
    %472 = vmatmul.mubr.bf16.gmra.mrb[0].mxu0 %v402
    %v473 = vpop.f32.mrb[0].mxu0
    %v474 = vadd.f32 %v363, %v473
    %v475 = vpop.f32.mrb[0].mxu0
    %v476 = vpop.f32.mrb[0].mxu0
    %v477 = vadd.f32 %v364, %v476
    %v478 = vpop.f32.mrb[0].mxu0
    %479 = vmatprep.mubr.bf16.mxu0 0
    %480 = vmatmul.mubr.bf16.gmra.mrb[0].mxu0 %v405
    %v481 = vpop.f32.mrb[0].mxu0
    %v482 = vadd.f32 %v365, %v481
    %v483 = vpop.f32.mrb[0].mxu0
    %v484 = vpop.f32.mrb[0].mxu0
    %v485 = vadd.f32 %v366, %v484
    %v486 = vpop.f32.mrb[0].mxu0
    %487 = vmatprep.mubr.bf16.mxu0 0
    %488 = vmatmul.mubr.bf16.gmra.mrb[0].mxu0 %v408
    %v489 = vpop.f32.mrb[0].mxu0
    %v490 = vadd.f32 %v367, %v489
    %v491 = vpop.f32.mrb[0].mxu0
    %v492 = vpop.f32.mrb[0].mxu0
    %v493 = vadd.f32 %v368, %v492
    %v494 = vpop.f32.mrb[0].mxu0
    %495 = vmatprep.mubr.bf16.mxu0 0
    %496 = vmatmul.mubr.bf16.gmra.mrb[0].mxu0 %v411
    %v497 = vpop.f32.mrb[0].mxu0
    %v498 = vadd.f32 %v369, %v497
    %v499 = vpop.f32.mrb[0].mxu0
    %v500 = vpop.f32.mrb[0].mxu0
    %v501 = vadd.f32 %v370, %v500
    %v502 = vpop.f32.mrb[0].mxu0
    %503 = vmatprep.mubr.bf16.mxu0 0
    %504 = vmatmul.mubr.bf16.gmra.mrb[0].mxu0 %v414
    %v505 = vpop.f32.mrb[0].mxu0
    %v506 = vadd.f32 %v371, %v505
    %v507 = vpop.f32.mrb[0].mxu0
    %v508 = vpop.f32.mrb[0].mxu0
    %v509 = vadd.f32 %v372, %v508
    %v510 = vpop.f32.mrb[0].mxu0
    %511 = vmatprep.mubr.bf16.mxu0 0
    %512 = vmatmul.mubr.bf16.gmra.mrb[0].mxu0 %v417
    %v513 = vpop.f32.mrb[0].mxu0
    %v514 = vadd.f32 %v373, %v513
    %v515 = vpop.f32.mrb[0].mxu0
    %v516 = vpop.f32.mrb[0].mxu0
    %v517 = vadd.f32 %v374, %v516
    %v518 = vpop.f32.mrb[0].mxu0
    %519 = vdwg.mxu0
    %520 = vmax.xlane.f32.xlu0 %v458
    %v521 = vpop.xlane.xlu0 %520
    %522 = vmax.xlane.f32.xlu0 %v461
    %v523 = vpop.xlane.xlu0 %522
    %524 = vmax.xlane.f32.xlu0 %v466
    %v525 = vpop.xlane.xlu0 %524
    %526 = vmax.xlane.f32.xlu0 %v469
    %v527 = vpop.xlane.xlu0 %526
    %528 = vmax.xlane.f32.xlu0 %v474
    %v529 = vpop.xlane.xlu0 %528
    %530 = vmax.xlane.f32.xlu0 %v477
    %v531 = vpop.xlane.xlu0 %530
    %532 = vmax.xlane.f32.xlu0 %v482
    %v533 = vpop.xlane.xlu0 %532
    %534 = vmax.xlane.f32.xlu0 %v485
    %v535 = vpop.xlane.xlu0 %534
    %536 = vmax.xlane.f32.xlu0 %v490
    %v537 = vpop.xlane.xlu0 %536
    %538 = vmax.xlane.f32.xlu0 %v493
    %v539 = vpop.xlane.xlu0 %538
    %540 = vmax.xlane.f32.xlu0 %v498
    %v541 = vpop.xlane.xlu0 %540
    %542 = vmax.xlane.f32.xlu0 %v501
    %v543 = vpop.xlane.xlu0 %542
    %544 = vmax.xlane.f32.xlu0 %v506
    %v545 = vpop.xlane.xlu0 %544
    %546 = vmax.xlane.f32.xlu0 %v509
    %v547 = vpop.xlane.xlu0 %546
    %548 = vmax.xlane.f32.xlu0 %v514
    %v549 = vpop.xlane.xlu0 %548
    %550 = vmax.xlane.f32.xlu0 %v517
    %v551 = vpop.xlane.xlu0 %550
    %v552 = vsub.f32 %v458, %v521
    %v553 = vsub.f32 %v461, %v523
    %v554 = vsub.f32 %v466, %v525
    %v555 = vsub.f32 %v469, %v527
    %v556 = vsub.f32 %v474, %v529
    %v557 = vsub.f32 %v477, %v531
    %v558 = vsub.f32 %v482, %v533
    %v559 = vsub.f32 %v485, %v535
    %v560 = vsub.f32 %v490, %v537
    %v561 = vsub.f32 %v493, %v539
    %v562 = vsub.f32 %v498, %v541
    %v563 = vsub.f32 %v501, %v543
    %v564 = vsub.f32 %v506, %v545
    %v565 = vsub.f32 %v509, %v547
    %v566 = vsub.f32 %v514, %v549
    %v567 = vsub.f32 %v517, %v551
    %v568 = vmul.f32 %v552, 1.442695
    %v569 = vpow.pop %v568
    %v570 = vmul.f32 %v553, 1.442695
    %v571 = vpow.pop %v570
    %v572 = vmul.f32 %v554, 1.442695
    %v573 = vpow.pop %v572
    %v574 = vmul.f32 %v555, 1.442695
    %v575 = vpow.pop %v574
    %v576 = vmul.f32 %v556, 1.442695
    %v577 = vpow.pop %v576
    %v578 = vmul.f32 %v557, 1.442695
    %v579 = vpow.pop %v578
    %v580 = vmul.f32 %v558, 1.442695
    %v581 = vpow.pop %v580
    %v582 = vmul.f32 %v559, 1.442695
    %v583 = vpow.pop %v582
    %v584 = vmul.f32 %v560, 1.442695
    %v585 = vpow.pop %v584
    %v586 = vmul.f32 %v561, 1.442695
    %v587 = vpow.pop %v586
    %v588 = vmul.f32 %v562, 1.442695
    %v589 = vpow.pop %v588
    %v590 = vmul.f32 %v563, 1.442695
    %v591 = vpow.pop %v590
    %v592 = vmul.f32 %v564, 1.442695
    %v593 = vpow.pop %v592
    %v594 = vmul.f32 %v565, 1.442695
    %v595 = vpow.pop %v594
    %v596 = vmul.f32 %v566, 1.442695
    %v597 = vpow.pop %v596
    %v598 = vmul.f32 %v567, 1.442695
    %v599 = vpow.pop %v598
    %600 = vadd.xlane.f32.xlu0 %v569
    %v601 = vpop.xlane.xlu0 %600
    %602 = vadd.xlane.f32.xlu0 %v571
    %v603 = vpop.xlane.xlu0 %602
    %604 = vadd.xlane.f32.xlu0 %v573
    %v605 = vpop.xlane.xlu0 %604
    %606 = vadd.xlane.f32.xlu0 %v575
    %v607 = vpop.xlane.xlu0 %606
    %608 = vadd.xlane.f32.xlu0 %v577
    %v609 = vpop.xlane.xlu0 %608
    %610 = vadd.xlane.f32.xlu0 %v579
    %v611 = vpop.xlane.xlu0 %610
    %612 = vadd.xlane.f32.xlu0 %v581
    %v613 = vpop.xlane.xlu0 %612
    %614 = vadd.xlane.f32.xlu0 %v583
    %v615 = vpop.xlane.xlu0 %614
    %616 = vadd.xlane.f32.xlu0 %v585
    %v617 = vpop.xlane.xlu0 %616
    %618 = vadd.xlane.f32.xlu0 %v587
    %v619 = vpop.xlane.xlu0 %618
    %620 = vadd.xlane.f32.xlu0 %v589
    %v621 = vpop.xlane.xlu0 %620
    %622 = vadd.xlane.f32.xlu0 %v591
    %v623 = vpop.xlane.xlu0 %622
    %624 = vadd.xlane.f32.xlu0 %v593
    %v625 = vpop.xlane.xlu0 %624
    %626 = vadd.xlane.f32.xlu0 %v595
    %v627 = vpop.xlane.xlu0 %626
    %628 = vadd.xlane.f32.xlu0 %v597
    %v629 = vpop.xlane.xlu0 %628
    %630 = vadd.xlane.f32.xlu0 %v599
    %v631 = vpop.xlane.xlu0 %630
    %v632 = vrcp.pop %v601
    %v633 = vrcp.pop %v603
    %v634 = vrcp.pop %v605
    %v635 = vrcp.pop %v607
    %v636 = vrcp.pop %v609
    %v637 = vrcp.pop %v611
    %v638 = vrcp.pop %v613
    %v639 = vrcp.pop %v615
    %v640 = vrcp.pop %v617
    %v641 = vrcp.pop %v619
    %v642 = vrcp.pop %v621
    %v643 = vrcp.pop %v623
    %v644 = vrcp.pop %v625
    %v645 = vrcp.pop %v627
    %v646 = vrcp.pop %v629
    %v647 = vrcp.pop %v631
    %v648 = vmul.f32 %v569, %v632
    %v649 = vmul.f32 %v571, %v633
    %v650 = vmul.f32 %v573, %v634
    %v651 = vmul.f32 %v575, %v635
    %v652 = vmul.f32 %v577, %v636
    %v653 = vmul.f32 %v579, %v637
    %v654 = vmul.f32 %v581, %v638
    %v655 = vmul.f32 %v583, %v639
    %v656 = vmul.f32 %v585, %v640
    %v657 = vmul.f32 %v587, %v641
    %v658 = vmul.f32 %v589, %v642
    %v659 = vmul.f32 %v591, %v643
    %v660 = vmul.f32 %v593, %v644
    %v661 = vmul.f32 %v595, %v645
    %v662 = vmul.f32 %v597, %v646
    %v663 = vmul.f32 %v599, %v647
    %v664 = vpack.c.bf16 %v649, %v648
    %v665 = vpack.c.bf16 %v651, %v650
    %v666 = vpack.c.bf16 %v653, %v652
    %v667 = vpack.c.bf16 %v655, %v654
    %v668 = vpack.c.bf16 %v657, %v656
    %v669 = vpack.c.bf16 %v659, %v658
    %v670 = vpack.c.bf16 %v661, %v660
    %v671 = vpack.c.bf16 %v663, %v662
    %672 = vmatprep.subr.bf16.mxu0 0
    %673 = vmatpush1.bf16.msra.mxu0 %v664
    %674 = vmatprep.subr.bf16.mxu0 0
    %675 = vmatpush1.bf16.msra.mxu0 %v665
    %676 = vmatprep.subr.bf16.mxu0 0
    %677 = vmatpush1.bf16.msra.mxu0 %v666
    %678 = vmatprep.subr.bf16.mxu0 0
    %679 = vmatpush1.bf16.msra.mxu0 %v667
    %680 = vmatprep.subr.bf16.mxu0 0
    %681 = vmatpush1.bf16.msra.mxu0 %v668
    %682 = vmatprep.subr.bf16.mxu0 0
    %683 = vmatpush1.bf16.msra.mxu0 %v669
    %684 = vmatprep.subr.bf16.mxu0 0
    %685 = vmatpush1.bf16.msra.mxu0 %v670
    %686 = vmatprep.subr.bf16.mxu0 0
    %687 = vmatpush1.bf16.msra.mxu0 %v671
    %688 = vmatprep.subr.bf16.mxu0 0
    %689 = vmatpush1.bf16.msra.mxu0 0
    %690 = vmatprep.subr.bf16.mxu0 0
    %691 = vmatpush1.bf16.msra.mxu0 0
    %692 = vmatprep.subr.bf16.mxu0 0
    %693 = vmatpush1.bf16.msra.mxu0 0
    %694 = vmatprep.subr.bf16.mxu0 0
    %695 = vmatpush1.bf16.msra.mxu0 0
    %696 = vmatprep.subr.bf16.mxu0 0
    %697 = vmatpush1.bf16.msra.mxu0 0
    %698 = vmatprep.subr.bf16.mxu0 0
    %699 = vmatpush1.bf16.msra.mxu0 0
    %700 = vmatprep.subr.bf16.mxu0 0
    %701 = vmatpush1.bf16.msra.mxu0 0
    %702 = vmatprep.subr.bf16.mxu0 0
    %703 = vmatpush1.bf16.msra.mxu0 0
    %704 = vmatprep.mubr.bf16.mxu0 0
    %705 = vmatmul.mubr.bf16.gmra.mrb[0].mxu0 %v377
    %v706 = vpop.f32.mrb[0].mxu0
    %v707 = vadd.f32 0.0, %v706
    %v708 = vpop.f32.mrb[0].mxu0
    %v709 = vpop.f32.mrb[0].mxu0
    %v710 = vpop.f32.mrb[0].mxu0
    %711 = vdwg.mxu0
    %712 = vst [vmem:[#allocation2] sm:$0xff] %v707
    %v713 = vpack.c.bf16 %v358, %v358
    %v714 = vpack.c.bf16 %v307, %v307
    %v715 = vpack.c.bf16 %v347, %v347
    %716 = vxpose.xlu0.c.b16.start [1/8] %v713, 128
    %717 = vxpose.xlu0.c.b16.cont [2/8] 0, 128
    %718 = vxpose.xlu0.c.b16.cont [3/8] 0, 128
    %719 = vxpose.xlu0.c.b16.cont [4/8] 0, 128
    %720 = vxpose.xlu0.c.b16.cont [5/8] 0, 128
    %721 = vxpose.xlu0.c.b16.cont [6/8] 0, 128
    %722 = vxpose.xlu0.c.b16.cont [7/8] 0, 128
    %723 = vxpose.xlu0.c.b16.end [8/8] 0, 128
    %v724 = vpop.trf.xlu0
    %v725 = vpop.trf.xlu0
    %v726 = vpop.trf.xlu0
    %v727 = vpop.trf.xlu0
    %v728 = vpop.trf.xlu0
    %v729 = vpop.trf.xlu0
    %v730 = vpop.trf.xlu0
    %v731 = vpop.trf.xlu0
    %v733 = vsel %vm394, %v724, 0
    %v736 = vsel %vm394, %v725, 0
    %v739 = vsel %vm394, %v726, 0
    %v742 = vsel %vm394, %v727, 0
    %v745 = vsel %vm394, %v728, 0
    %v748 = vsel %vm394, %v729, 0
    %v751 = vsel %vm394, %v730, 0
    %v754 = vsel %vm394, %v731, 0
    %v757 = vsel %vm419, %v714, 0
    %759 = vmatprep.subr.bf16.mxu0 0
    %760 = vmatpush1.bf16.msra.mxu0 %v757
    %761 = vmatprep.subr.bf16.mxu0 0
    %762 = vmatpush1.bf16.msra.mxu0 0
    %763 = vmatprep.subr.bf16.mxu0 0
    %764 = vmatpush1.bf16.msra.mxu0 0
    %765 = vmatprep.subr.bf16.mxu0 0
    %766 = vmatpush1.bf16.msra.mxu0 0
    %767 = vmatprep.subr.bf16.mxu0 0
    %768 = vmatpush1.bf16.msra.mxu0 0
    %769 = vmatprep.subr.bf16.mxu0 0
    %770 = vmatpush1.bf16.msra.mxu0 0
    %771 = vmatprep.subr.bf16.mxu0 0
    %772 = vmatpush1.bf16.msra.mxu0 0
    %773 = vmatprep.subr.bf16.mxu0 0
    %774 = vmatpush1.bf16.msra.mxu0 0
    %775 = vmatprep.subr.bf16.mxu0 0
    %776 = vmatpush1.bf16.msra.mxu0 0
    %777 = vmatprep.subr.bf16.mxu0 0
    %778 = vmatpush1.bf16.msra.mxu0 0
    %779 = vmatprep.subr.bf16.mxu0 0
    %780 = vmatpush1.bf16.msra.mxu0 0
    %781 = vmatprep.subr.bf16.mxu0 0
    %782 = vmatpush1.bf16.msra.mxu0 0
    %783 = vmatprep.subr.bf16.mxu0 0
    %784 = vmatpush1.bf16.msra.mxu0 0
    %785 = vmatprep.subr.bf16.mxu0 0
    %786 = vmatpush1.bf16.msra.mxu0 0
    %787 = vmatprep.subr.bf16.mxu0 0
    %788 = vmatpush1.bf16.msra.mxu0 0
    %789 = vmatprep.subr.bf16.mxu0 0
    %790 = vmatpush1.bf16.msra.mxu0 0
    %791 = vmatprep.mubr.bf16.mxu0 0
    %792 = vmatmul.mubr.bf16.gmra.mrb[0].mxu0 %v733
    %v793 = vpop.f32.mrb[0].mxu0
    %v794 = vadd.f32 %v359, %v793
    %v795 = vpop.f32.mrb[0].mxu0
    %v796 = vpop.f32.mrb[0].mxu0
    %v797 = vadd.f32 %v360, %v796
    %v798 = vpop.f32.mrb[0].mxu0
    %799 = vmatprep.mubr.bf16.mxu0 0
    %800 = vmatmul.mubr.bf16.gmra.mrb[0].mxu0 %v736
    %v801 = vpop.f32.mrb[0].mxu0
    %v802 = vadd.f32 %v361, %v801
    %v803 = vpop.f32.mrb[0].mxu0
    %v804 = vpop.f32.mrb[0].mxu0
    %v805 = vadd.f32 %v362, %v804
    %v806 = vpop.f32.mrb[0].mxu0
    %807 = vmatprep.mubr.bf16.mxu0 0
    %808 = vmatmul.mubr.bf16.gmra.mrb[0].mxu0 %v739
    %v809 = vpop.f32.mrb[0].mxu0
    %v810 = vadd.f32 %v363, %v809
    %v811 = vpop.f32.mrb[0].mxu0
    %v812 = vpop.f32.mrb[0].mxu0
    %v813 = vadd.f32 %v364, %v812
    %v814 = vpop.f32.mrb[0].mxu0
    %815 = vmatprep.mubr.bf16.mxu0 0
    %816 = vmatmul.mubr.bf16.gmra.mrb[0].mxu0 %v742
    %v817 = vpop.f32.mrb[0].mxu0
    %v818 = vadd.f32 %v365, %v817
    %v819 = vpop.f32.mrb[0].mxu0
    %v820 = vpop.f32.mrb[0].mxu0
    %v821 = vadd.f32 %v366, %v820
    %v822 = vpop.f32.mrb[0].mxu0
    %823 = vmatprep.mubr.bf16.mxu0 0
    %824 = vmatmul.mubr.bf16.gmra.mrb[0].mxu0 %v745
    %v825 = vpop.f32.mrb[0].mxu0
    %v826 = vadd.f32 %v367, %v825
    %v827 = vpop.f32.mrb[0].mxu0
    %v828 = vpop.f32.mrb[0].mxu0
    %v829 = vadd.f32 %v368, %v828
    %v830 = vpop.f32.mrb[0].mxu0
    %831 = vmatprep.mubr.bf16.mxu0 0
    %832 = vmatmul.mubr.bf16.gmra.mrb[0].mxu0 %v748
    %v833 = vpop.f32.mrb[0].mxu0
    %v834 = vadd.f32 %v369, %v833
    %v835 = vpop.f32.mrb[0].mxu0
    %v836 = vpop.f32.mrb[0].mxu0
    %v837 = vadd.f32 %v370, %v836
    %v838 = vpop.f32.mrb[0].mxu0
    %839 = vmatprep.mubr.bf16.mxu0 0
    %840 = vmatmul.mubr.bf16.gmra.mrb[0].mxu0 %v751
    %v841 = vpop.f32.mrb[0].mxu0
    %v842 = vadd.f32 %v371, %v841
    %v843 = vpop.f32.mrb[0].mxu0
    %v844 = vpop.f32.mrb[0].mxu0
    %v845 = vadd.f32 %v372, %v844
    %v846 = vpop.f32.mrb[0].mxu0
    %847 = vmatprep.mubr.bf16.mxu0 0
    %848 = vmatmul.mubr.bf16.gmra.mrb[0].mxu0 %v754
    %v849 = vpop.f32.mrb[0].mxu0
    %v850 = vadd.f32 %v373, %v849
    %v851 = vpop.f32.mrb[0].mxu0
    %v852 = vpop.f32.mrb[0].mxu0
    %v853 = vadd.f32 %v374, %v852
    %v854 = vpop.f32.mrb[0].mxu0
    %855 = vdwg.mxu0
    %856 = vmax.xlane.f32.xlu0 %v794
    %v857 = vpop.xlane.xlu0 %856
    %858 = vmax.xlane.f32.xlu0 %v797
    %v859 = vpop.xlane.xlu0 %858
    %860 = vmax.xlane.f32.xlu0 %v802
    %v861 = vpop.xlane.xlu0 %860
    %862 = vmax.xlane.f32.xlu0 %v805
    %v863 = vpop.xlane.xlu0 %862
    %864 = vmax.xlane.f32.xlu0 %v810
    %v865 = vpop.xlane.xlu0 %864
    %866 = vmax.xlane.f32.xlu0 %v813
    %v867 = vpop.xlane.xlu0 %866
    %868 = vmax.xlane.f32.xlu0 %v818
    %v869 = vpop.xlane.xlu0 %868
    %870 = vmax.xlane.f32.xlu0 %v821
    %v871 = vpop.xlane.xlu0 %870
    %872 = vmax.xlane.f32.xlu0 %v826
    %v873 = vpop.xlane.xlu0 %872
    %874 = vmax.xlane.f32.xlu0 %v829
    %v875 = vpop.xlane.xlu0 %874
    %876 = vmax.xlane.f32.xlu0 %v834
    %v877 = vpop.xlane.xlu0 %876
    %878 = vmax.xlane.f32.xlu0 %v837
    %v879 = vpop.xlane.xlu0 %878
    %880 = vmax.xlane.f32.xlu0 %v842
    %v881 = vpop.xlane.xlu0 %880
    %882 = vmax.xlane.f32.xlu0 %v845
    %v883 = vpop.xlane.xlu0 %882
    %884 = vmax.xlane.f32.xlu0 %v850
    %v885 = vpop.xlane.xlu0 %884
    %886 = vmax.xlane.f32.xlu0 %v853
    %v887 = vpop.xlane.xlu0 %886
    %v888 = vsub.f32 %v794, %v857
    %v889 = vsub.f32 %v797, %v859
    %v890 = vsub.f32 %v802, %v861
    %v891 = vsub.f32 %v805, %v863
    %v892 = vsub.f32 %v810, %v865
    %v893 = vsub.f32 %v813, %v867
    %v894 = vsub.f32 %v818, %v869
    %v895 = vsub.f32 %v821, %v871
    %v896 = vsub.f32 %v826, %v873
    %v897 = vsub.f32 %v829, %v875
    %v898 = vsub.f32 %v834, %v877
    %v899 = vsub.f32 %v837, %v879
    %v900 = vsub.f32 %v842, %v881
    %v901 = vsub.f32 %v845, %v883
    %v902 = vsub.f32 %v850, %v885
    %v903 = vsub.f32 %v853, %v887
    %v904 = vmul.f32 %v888, 1.442695
    %v905 = vpow.pop %v904
    %v906 = vmul.f32 %v889, 1.442695
    %v907 = vpow.pop %v906
    %v908 = vmul.f32 %v890, 1.442695
    %v909 = vpow.pop %v908
    %v910 = vmul.f32 %v891, 1.442695
    %v911 = vpow.pop %v910
    %v912 = vmul.f32 %v892, 1.442695
    %v913 = vpow.pop %v912
    %v914 = vmul.f32 %v893, 1.442695
    %v915 = vpow.pop %v914
    %v916 = vmul.f32 %v894, 1.442695
    %v917 = vpow.pop %v916
    %v918 = vmul.f32 %v895, 1.442695
    %v919 = vpow.pop %v918
    %v920 = vmul.f32 %v896, 1.442695
    %v921 = vpow.pop %v920
    %v922 = vmul.f32 %v897, 1.442695
    %v923 = vpow.pop %v922
    %v924 = vmul.f32 %v898, 1.442695
    %v925 = vpow.pop %v924
    %v926 = vmul.f32 %v899, 1.442695
    %v927 = vpow.pop %v926
    %v928 = vmul.f32 %v900, 1.442695
    %v929 = vpow.pop %v928
    %v930 = vmul.f32 %v901, 1.442695
    %v931 = vpow.pop %v930
    %v932 = vmul.f32 %v902, 1.442695
    %v933 = vpow.pop %v932
    %v934 = vmul.f32 %v903, 1.442695
    %v935 = vpow.pop %v934
    %936 = vadd.xlane.f32.xlu0 %v905
    %v937 = vpop.xlane.xlu0 %936
    %938 = vadd.xlane.f32.xlu0 %v907
    %v939 = vpop.xlane.xlu0 %938
    %940 = vadd.xlane.f32.xlu0 %v909
    %v941 = vpop.xlane.xlu0 %940
    %942 = vadd.xlane.f32.xlu0 %v911
    %v943 = vpop.xlane.xlu0 %942
    %944 = vadd.xlane.f32.xlu0 %v913
    %v945 = vpop.xlane.xlu0 %944
    %946 = vadd.xlane.f32.xlu0 %v915
    %v947 = vpop.xlane.xlu0 %946
    %948 = vadd.xlane.f32.xlu0 %v917
    %v949 = vpop.xlane.xlu0 %948
    %950 = vadd.xlane.f32.xlu0 %v919
    %v951 = vpop.xlane.xlu0 %950
    %952 = vadd.xlane.f32.xlu0 %v921
    %v953 = vpop.xlane.xlu0 %952
    %954 = vadd.xlane.f32.xlu0 %v923
    %v955 = vpop.xlane.xlu0 %954
    %956 = vadd.xlane.f32.xlu0 %v925
    %v957 = vpop.xlane.xlu0 %956
    %958 = vadd.xlane.f32.xlu0 %v927
    %v959 = vpop.xlane.xlu0 %958
    %960 = vadd.xlane.f32.xlu0 %v929
    %v961 = vpop.xlane.xlu0 %960
    %962 = vadd.xlane.f32.xlu0 %v931
    %v963 = vpop.xlane.xlu0 %962
    %964 = vadd.xlane.f32.xlu0 %v933
    %v965 = vpop.xlane.xlu0 %964
    %966 = vadd.xlane.f32.xlu0 %v935
    %v967 = vpop.xlane.xlu0 %966
    %v968 = vrcp.pop %v937
    %v969 = vrcp.pop %v939
    %v970 = vrcp.pop %v941
    %v971 = vrcp.pop %v943
    %v972 = vrcp.pop %v945
    %v973 = vrcp.pop %v947
    %v974 = vrcp.pop %v949
    %v975 = vrcp.pop %v951
    %v976 = vrcp.pop %v953
    %v977 = vrcp.pop %v955
    %v978 = vrcp.pop %v957
    %v979 = vrcp.pop %v959
    %v980 = vrcp.pop %v961
    %v981 = vrcp.pop %v963
    %v982 = vrcp.pop %v965
    %v983 = vrcp.pop %v967
    %v984 = vmul.f32 %v905, %v968
    %v985 = vmul.f32 %v907, %v969
    %v986 = vmul.f32 %v909, %v970
    %v987 = vmul.f32 %v911, %v971
    %v988 = vmul.f32 %v913, %v972
    %v989 = vmul.f32 %v915, %v973
    %v990 = vmul.f32 %v917, %v974
    %v991 = vmul.f32 %v919, %v975
    %v992 = vmul.f32 %v921, %v976
    %v993 = vmul.f32 %v923, %v977
    %v994 = vmul.f32 %v925, %v978
    %v995 = vmul.f32 %v927, %v979
    %v996 = vmul.f32 %v929, %v980
    %v997 = vmul.f32 %v931, %v981
    %v998 = vmul.f32 %v933, %v982
    %v999 = vmul.f32 %v935, %v983
    %v1000 = vpack.c.bf16 %v985, %v984
    %v1001 = vpack.c.bf16 %v987, %v986
    %v1002 = vpack.c.bf16 %v989, %v988
    %v1003 = vpack.c.bf16 %v991, %v990
    %v1004 = vpack.c.bf16 %v993, %v992
    %v1005 = vpack.c.bf16 %v995, %v994
    %v1006 = vpack.c.bf16 %v997, %v996
    %v1007 = vpack.c.bf16 %v999, %v998
    %1008 = vmatprep.subr.bf16.mxu0 0
    %1009 = vmatpush1.bf16.msra.mxu0 %v1000
    %1010 = vmatprep.subr.bf16.mxu0 0
    %1011 = vmatpush1.bf16.msra.mxu0 %v1001
    %1012 = vmatprep.subr.bf16.mxu0 0
    %1013 = vmatpush1.bf16.msra.mxu0 %v1002
    %1014 = vmatprep.subr.bf16.mxu0 0
    %1015 = vmatpush1.bf16.msra.mxu0 %v1003
    %1016 = vmatprep.subr.bf16.mxu0 0
    %1017 = vmatpush1.bf16.msra.mxu0 %v1004
    %1018 = vmatprep.subr.bf16.mxu0 0
    %1019 = vmatpush1.bf16.msra.mxu0 %v1005
    %1020 = vmatprep.subr.bf16.mxu0 0
    %1021 = vmatpush1.bf16.msra.mxu0 %v1006
    %1022 = vmatprep.subr.bf16.mxu0 0
    %1023 = vmatpush1.bf16.msra.mxu0 %v1007
    %1024 = vmatprep.subr.bf16.mxu0 0
    %1025 = vmatpush1.bf16.msra.mxu0 0
    %1026 = vmatprep.subr.bf16.mxu0 0
    %1027 = vmatpush1.bf16.msra.mxu0 0
    %1028 = vmatprep.subr.bf16.mxu0 0
    %1029 = vmatpush1.bf16.msra.mxu0 0
    %1030 = vmatprep.subr.bf16.mxu0 0
    %1031 = vmatpush1.bf16.msra.mxu0 0
    %1032 = vmatprep.subr.bf16.mxu0 0
    %1033 = vmatpush1.bf16.msra.mxu0 0
    %1034 = vmatprep.subr.bf16.mxu0 0
    %1035 = vmatpush1.bf16.msra.mxu0 0
    %1036 = vmatprep.subr.bf16.mxu0 0
    %1037 = vmatpush1.bf16.msra.mxu0 0
    %1038 = vmatprep.subr.bf16.mxu0 0
    %1039 = vmatpush1.bf16.msra.mxu0 0
    %1040 = vmatprep.mubr.bf16.mxu0 0
    %1041 = vmatmul.mubr.bf16.gmra.mrb[0].mxu0 %v715
    %v1042 = vpop.f32.mrb[0].mxu0
    %v1043 = vadd.f32 0.0, %v1042
    %v1044 = vpop.f32.mrb[0].mxu0
    %v1045 = vpop.f32.mrb[0].mxu0
    %v1046 = vpop.f32.mrb[0].mxu0
    %1047 = vdwg.mxu0
    %1048 = vst [vmem:[#allocation2 + $0x8] sm:$0xff] %v1043
    %v1049 = vld [vmem:[#allocation2] sm:$0xff]
    %v1050 = vld [vmem:[#allocation2 + $0x8] sm:$0xff]
    %v1051 = vpack.c.bf16 %v1050, %v1049
    %v1052 = vld [vmem:[#allocation11] sm:$0xf]
    %v1053 = vld [vmem:[#allocation11 + $0x4] sm:$0xf]
    %v1054 = vld [vmem:[#allocation11 + $0x8] sm:$0xf]
    %v1055 = vld [vmem:[#allocation11 + $0xc] sm:$0xf]
    %v1056 = vld [vmem:[#allocation11 + $0x10] sm:$0xf]
    %v1057 = vld [vmem:[#allocation11 + $0x14] sm:$0xf]
    %v1058 = vld [vmem:[#allocation11 + $0x18] sm:$0xf]
    %v1059 = vld [vmem:[#allocation11 + $0x1c] sm:$0xf]
    %v1060 = vld [vmem:[#allocation11 + $0x20] sm:$0xf]
    %v1061 = vld [vmem:[#allocation11 + $0x24] sm:$0xf]
    %v1062 = vld [vmem:[#allocation11 + $0x28] sm:$0xf]
    %v1063 = vld [vmem:[#allocation11 + $0x2c] sm:$0xf]
    %v1064 = vld [vmem:[#allocation11 + $0x30] sm:$0xf]
    %v1065 = vld [vmem:[#allocation11 + $0x34] sm:$0xf]
    %v1066 = vld [vmem:[#allocation11 + $0x38] sm:$0xf]
    %v1067 = vld [vmem:[#allocation11 + $0x3c] sm:$0xf]
    %v1068 = vld [vmem:[#allocation12] sm:$0x1]
    %v1070 = vlaneseq
    %v1071 = vshrl.u32 %v1070, 7
    %v1072 = vsub.s32 0, %v1071
    %v1073 = vrot.slane %v1068, %v1072
    %v1091 = vunpack.c.l.b16 %v1052
    %v1092 = vunpack.c.l.b16 %v1053
    %v1093 = vunpack.c.l.b16 %v1054
    %v1094 = vunpack.c.l.b16 %v1055
    %v1095 = vunpack.c.l.b16 %v1056
    %v1096 = vunpack.c.l.b16 %v1057
    %v1097 = vunpack.c.l.b16 %v1058
    %v1098 = vunpack.c.l.b16 %v1059
    %v1099 = vunpack.c.l.b16 %v1060
    %v1100 = vunpack.c.l.b16 %v1061
    %v1101 = vunpack.c.l.b16 %v1062
    %v1102 = vunpack.c.l.b16 %v1063
    %v1103 = vunpack.c.l.b16 %v1064
    %v1104 = vunpack.c.l.b16 %v1065
    %v1105 = vunpack.c.l.b16 %v1066
    %v1106 = vunpack.c.l.b16 %v1067
    %v1107 = vpack.c.b16 %v1092, %v1091
    %v1108 = vpack.c.b16 %v1094, %v1093
    %v1109 = vpack.c.b16 %v1096, %v1095
    %v1110 = vpack.c.b16 %v1098, %v1097
    %v1111 = vpack.c.b16 %v1100, %v1099
    %v1112 = vpack.c.b16 %v1102, %v1101
    %v1113 = vpack.c.b16 %v1104, %v1103
    %v1114 = vpack.c.b16 %v1106, %v1105
    %1123 = vmatprep.subr.bf16.mxu0 0
    %1124 = vmatpush1.bf16.msra.mxu0 %v1107
    %1125 = vmatprep.subr.bf16.mxu0 0
    %1126 = vmatpush1.bf16.msra.mxu0 %v1108
    %1127 = vmatprep.subr.bf16.mxu0 0
    %1128 = vmatpush1.bf16.msra.mxu0 %v1109
    %1129 = vmatprep.subr.bf16.mxu0 0
    %1130 = vmatpush1.bf16.msra.mxu0 %v1110
    %1131 = vmatprep.subr.bf16.mxu0 0
    %1132 = vmatpush1.bf16.msra.mxu0 %v1111
    %1133 = vmatprep.subr.bf16.mxu0 0
    %1134 = vmatpush1.bf16.msra.mxu0 %v1112
    %1135 = vmatprep.subr.bf16.mxu0 0
    %1136 = vmatpush1.bf16.msra.mxu0 %v1113
    %1137 = vmatprep.subr.bf16.mxu0 0
    %1138 = vmatpush1.bf16.msra.mxu0 %v1114
    %1139 = vmatprep.subr.bf16.mxu0 0
    %1140 = vmatpush1.bf16.msra.mxu0 0
    %1141 = vmatprep.subr.bf16.mxu0 0
    %1142 = vmatpush1.bf16.msra.mxu0 0
    %1143 = vmatprep.subr.bf16.mxu0 0
    %1144 = vmatpush1.bf16.msra.mxu0 0
    %1145 = vmatprep.subr.bf16.mxu0 0
    %1146 = vmatpush1.bf16.msra.mxu0 0
    %1147 = vmatprep.subr.bf16.mxu0 0
    %1148 = vmatpush1.bf16.msra.mxu0 0
    %1149 = vmatprep.subr.bf16.mxu0 0
    %1150 = vmatpush1.bf16.msra.mxu0 0
    %1151 = vmatprep.subr.bf16.mxu0 0
    %1152 = vmatpush1.bf16.msra.mxu0 0
    %1153 = vmatprep.subr.bf16.mxu0 0
    %1154 = vmatpush1.bf16.msra.mxu0 0
    %1155 = vmatprep.mubr.bf16.mxu0 0
    %1156 = vmatmul.mubr.bf16.gmra.mrb[0].mxu0 %v1051
    %v1157 = vpop.f32.mrb[0].mxu0
    %v1158 = vadd.f32 %v1073, %v1157
    %v1159 = vpop.f32.mrb[0].mxu0
    %v1160 = vpop.f32.mrb[0].mxu0
    %v1161 = vadd.f32 %v1073, %v1160
    %v1162 = vpop.f32.mrb[0].mxu0
    %1163 = vdwg.mxu0
    %1164 = vst [vmem:[#allocation14] sm:$0xff] %v1158
    %1165 = vst [vmem:[#allocation14 + $0x8] sm:$0xff] %v1161
    // Predicated region
    $region50: #{tpu_custom_call.1} parent=1 // pred_check
      _
    $region51: #{tpu_custom_call.1} parent=1 // pred_check_branch
      %1167 = sbr.rel (0) target = $region53
    $region52: #{tpu_custom_call.1} parent=1 // pred_region
      %s1169 = ssub.s32 256, 256
      %1170 = vsyncadd [#allocation5], %s1169
      %s1171 = sshll.u32 [#allocation14], 4
      %s1172 = int_to_ptr.vmem [resolvable:$true] %s1171
      %1177 = dma.vmem_to_hbm [thread:$0]  %s1172, 256, %s6, [#allocation5], 128, 128, 8
    $region53: #{tpu_custom_call.1} parent=1 // pred_fallthru
      _
    // Predicated region
    $region54: #{tpu_custom_call.1} parent=1 // pred_check
      _
    $region55: #{tpu_custom_call.1} parent=1 // pred_check_branch
      %1179 = sbr.rel (0) target = $region57
    $region56: #{tpu_custom_call.1} parent=1 // pred_region
      %1180 = dma.done [#allocation5], 256
    $region57: #{tpu_custom_call.1} parent=1 // pred_fallthru
      _
    %1181 = vsyncpa [#allocation4], 1
    %1182 = vsyncpa [#allocation7], 1
    %1183 = vsyncpa [#allocation10], 1
    %1184 = vsyncpa [#allocation13], 1
    %1185 = vsyncpa [#allocation5], 1

</llo_original>
